<compile_context>
chip_gen: v5e
topology: v5e:2x2
jax: 0.10.0
libtpu: 0.0.40
codegen_flags: <defaults>
</compile_context>

<pallas_src>
import functools

import jax
import jax.numpy as jnp
from jax import lax
from jax.experimental import pallas as pl
from jax.experimental.pallas import tpu as pltpu


def _round_up(x: int, m: int) -> int:
    return (x + m - 1) // m * m


def _vmem_params():
    """Return (block-bytes budget, scoped vmem limit) sized per chip gen."""
    try:
        cap = int(pltpu.get_tpu_info().vmem_capacity_bytes)
    except Exception:
        cap = 64 << 20          # unknown chip -> assume smallest (v7x: 64 MiB/TC)
    # Budget covers double-buffered in+out blocks; leave headroom for scratch.
    budget = max(8 << 20, min(40 << 20, cap // 3))   # ~40 MiB v5e/v6e, ~21 MiB v7x
    limit = int(min(cap - (8 << 20), 2 * budget))
    return budget, limit


def _build_padded(x, *, pad: int):
    """Reflect-pad a (b, H, W) register block to (b, H+2p, W+2p).

    Pure register/XLU work (static width-1 slices + concatenates); no stores,
    so the caller can issue one aligned full-block store.  Row reflection
    first, then column reflection sourced from the row-padded block, which
    gives the correct double-reflected corners (matches jnp.pad 'reflect').
    """
    _, H, W = x.shape
    top = [x[:, pad - r:pad - r + 1, :] for r in range(pad)]       # rows p..1
    bot = [x[:, H - 2 - r:H - 1 - r, :] for r in range(pad)]       # rows H-2..H-1-p
    xr = jnp.concatenate(top + [x] + bot, axis=1)                  # (b, Ho, W)
    left = [xr[:, :, pad - c:pad - c + 1] for c in range(pad)]     # cols p..1
    right = [xr[:, :, W - 2 - c:W - 1 - c] for c in range(pad)]    # cols W-2..W-1-p
    return jnp.concatenate(left + [xr] + right, axis=2)            # (b, Ho, Wo)


def _reflect_pad_kernel(x_ref, o_ref, *, pad: int, chunk: int):
    # x_ref: (B, H, W)   block of input planes
    # o_ref: (B, Ho, Wo) block of padded output planes
    B = x_ref.shape[0]
    nsub = B // chunk            # wrapper guarantees chunk divides B

    if nsub == 1:
        # Single aligned, full-block store.
        o_ref[...] = _build_padded(x_ref[...], pad=pad)
    else:
        def body(j, carry):
            s = pl.multiple_of(j * chunk, chunk)
            o_ref[pl.ds(s, chunk), :, :] = _build_padded(
                x_ref[pl.ds(s, chunk), :, :], pad=pad)
            return carry

        lax.fori_loop(0, nsub, body, 0)


@functools.partial(jax.jit, static_argnames=("curr_size", "ideal"))
def reflection_padding(x: jnp.ndarray, *, curr_size: int, ideal: int) -> jnp.ndarray:
    """Pallas implementation of Padding.forward for NCHW input x."""
    N, C, H, W = x.shape
    pad = (ideal - curr_size) // 2 if curr_size < ideal else 0
    if pad == 0:
        return x
    if pad >= H or pad >= W:
        raise ValueError(
            f"Reflection pad {pad} must be < spatial dims ({H}, {W}).")

    Ho, Wo = H + 2 * pad, W + 2 * pad
    NC = N * C
    itemsize = jnp.dtype(x.dtype).itemsize

    # Register-pressure bound for the in-register build: vregs per plane
    # ((8,128) tiles of the in + out planes), target <= ~48 live vregs/chunk.
    per_plane_vregs = (pl.cdiv(H, 8) * pl.cdiv(W, 128)
                       + pl.cdiv(Ho, 8) * pl.cdiv(Wo, 128))
    chunk = max(1, min(48 // per_plane_vregs, NC))

    # VMEM-budget bound for the plane-block size (double-buffered in + out).
    per_plane_bytes = 2 * (_round_up(H, 8) * _round_up(W, 128)
                           + _round_up(Ho, 8) * _round_up(Wo, 128)) * itemsize
    budget, vmem_limit = _vmem_params()
    B = max(1, min(budget // per_plane_bytes, NC))
    if NC >= 2 and B >= NC:
        # Keep grid length >= 2 so v7x can shard blocks across both
        # TensorCores; on single-TC chips one extra grid step is negligible.
        B = pl.cdiv(NC, 2)
        chunk = min(chunk, B)
    B = max(chunk, (B // chunk) * chunk)   # chunk | B (kernel relies on it)

    out_flat = pl.pallas_call(
        functools.partial(_reflect_pad_kernel, pad=pad, chunk=chunk),
        out_shape=jax.ShapeDtypeStruct((NC, Ho, Wo), x.dtype),
        grid_spec=pltpu.PrefetchScalarGridSpec(
            num_scalar_prefetch=0,
            grid=(pl.cdiv(NC, B),),                 # ragged last block is fine
            in_specs=[pl.BlockSpec((B, H, W), lambda i: (i, 0, 0))],
            out_specs=pl.BlockSpec((B, Ho, Wo), lambda i: (i, 0, 0)),
        ),
        compiler_params=pltpu.CompilerParams(
            dimension_semantics=("parallel",),
            vmem_limit_bytes=vmem_limit),
    )(x.reshape(NC, H, W))

    return out_flat.reshape(N, C, Ho, Wo)

# TODO(synk): if this pad feeds a downstream Pallas kernel (e.g. a conv), fuse
# the reflection into that kernel's input index_map instead of materializing
# the padded tensor (saves a full HBM round trip).


def _reference(x: jnp.ndarray, *, curr_size: int, ideal: int) -> jnp.ndarray:
    pad = (ideal - curr_size) // 2 if curr_size < ideal else 0
    if pad == 0:
        return x
    return jnp.pad(x, ((0, 0), (0, 0), (pad, pad), (pad, pad)), mode="reflect")


if __name__ == "__main__":
    # Small shapes consistent with the module: 16x16 spatial, ideal=24
    # -> ReflectionPad2d(4).
    N, C, H, W = 2, 4, 16, 16
    curr_size, ideal = 16, 24

    key = jax.random.PRNGKey(0)
    x = jax.random.normal(key, (N, C, H, W), dtype=jnp.float32)

    out = jax.block_until_ready(
        reflection_padding(x, curr_size=curr_size, ideal=ideal))

    ref = _reference(x, curr_size=curr_size, ideal=ideal)
    assert out.shape == ref.shape, (out.shape, ref.shape)
    # Pure data movement -> bit-exact.
    assert bool(jnp.array_equal(out, ref)), "mismatch vs reference"

    print("KERNEL_OK")
</pallas_src>

<mosaic_0001>
module attributes {stable_mosaic.version = 11 : i64} {
  func.func @_reflect_pad_kernel(%arg0: i32, %arg1: memref<4x16x16xf32, #tpu.memory_space<vmem>>, %arg2: memref<4x24x24xf32, #tpu.memory_space<vmem>>) attributes {dimension_semantics = [#tpu.dimension_semantics<parallel>], iteration_bounds = array<i64: 2>, scalar_prefetch = 0 : i64, scratch_operands = 0 : i64, tpu.core_type = #tpu.core_type<tc>, window_params = [{transform_indices = @transform_0, window_bounds = array<i64: 4, 16, 16>}, {transform_indices = @transform_1, window_bounds = array<i64: 4, 24, 24>}]} {
    %c0 = arith.constant 0 : index
    %c0_0 = arith.constant 0 : index
    %c0_1 = arith.constant 0 : index
    %0 = vector.load %arg1[%c0, %c0_0, %c0_1] : memref<4x16x16xf32, #tpu.memory_space<vmem>>, vector<4x16x16xf32>
    %1 = vector.extract_strided_slice %0 {offsets = [0, 4, 0], sizes = [4, 1, 16], strides = [1, 1, 1]} : vector<4x16x16xf32> to vector<4x1x16xf32>
    %2 = vector.extract_strided_slice %0 {offsets = [0, 3, 0], sizes = [4, 1, 16], strides = [1, 1, 1]} : vector<4x16x16xf32> to vector<4x1x16xf32>
    %3 = vector.extract_strided_slice %0 {offsets = [0, 2, 0], sizes = [4, 1, 16], strides = [1, 1, 1]} : vector<4x16x16xf32> to vector<4x1x16xf32>
    %4 = vector.extract_strided_slice %0 {offsets = [0, 1, 0], sizes = [4, 1, 16], strides = [1, 1, 1]} : vector<4x16x16xf32> to vector<4x1x16xf32>
    %5 = vector.extract_strided_slice %0 {offsets = [0, 14, 0], sizes = [4, 1, 16], strides = [1, 1, 1]} : vector<4x16x16xf32> to vector<4x1x16xf32>
    %6 = vector.extract_strided_slice %0 {offsets = [0, 13, 0], sizes = [4, 1, 16], strides = [1, 1, 1]} : vector<4x16x16xf32> to vector<4x1x16xf32>
    %7 = vector.extract_strided_slice %0 {offsets = [0, 12, 0], sizes = [4, 1, 16], strides = [1, 1, 1]} : vector<4x16x16xf32> to vector<4x1x16xf32>
    %8 = vector.extract_strided_slice %0 {offsets = [0, 11, 0], sizes = [4, 1, 16], strides = [1, 1, 1]} : vector<4x16x16xf32> to vector<4x1x16xf32>
    %9 = tpu.concatenate %1, %2, %3, %4, %0, %5, %6, %7, %8 in 1 : vector<4x1x16xf32>, vector<4x1x16xf32>, vector<4x1x16xf32>, vector<4x1x16xf32>, vector<4x16x16xf32>, vector<4x1x16xf32>, vector<4x1x16xf32>, vector<4x1x16xf32>, vector<4x1x16xf32> -> vector<4x24x16xf32>
    %10 = vector.extract_strided_slice %9 {offsets = [0, 0, 4], sizes = [4, 24, 1], strides = [1, 1, 1]} : vector<4x24x16xf32> to vector<4x24x1xf32>
    %11 = vector.extract_strided_slice %9 {offsets = [0, 0, 3], sizes = [4, 24, 1], strides = [1, 1, 1]} : vector<4x24x16xf32> to vector<4x24x1xf32>
    %12 = vector.extract_strided_slice %9 {offsets = [0, 0, 2], sizes = [4, 24, 1], strides = [1, 1, 1]} : vector<4x24x16xf32> to vector<4x24x1xf32>
    %13 = vector.extract_strided_slice %9 {offsets = [0, 0, 1], sizes = [4, 24, 1], strides = [1, 1, 1]} : vector<4x24x16xf32> to vector<4x24x1xf32>
    %14 = vector.extract_strided_slice %9 {offsets = [0, 0, 14], sizes = [4, 24, 1], strides = [1, 1, 1]} : vector<4x24x16xf32> to vector<4x24x1xf32>
    %15 = vector.extract_strided_slice %9 {offsets = [0, 0, 13], sizes = [4, 24, 1], strides = [1, 1, 1]} : vector<4x24x16xf32> to vector<4x24x1xf32>
    %16 = vector.extract_strided_slice %9 {offsets = [0, 0, 12], sizes = [4, 24, 1], strides = [1, 1, 1]} : vector<4x24x16xf32> to vector<4x24x1xf32>
    %17 = vector.extract_strided_slice %9 {offsets = [0, 0, 11], sizes = [4, 24, 1], strides = [1, 1, 1]} : vector<4x24x16xf32> to vector<4x24x1xf32>
    %18 = tpu.concatenate %10, %11, %12, %13, %9, %14, %15, %16, %17 in 2 : vector<4x24x1xf32>, vector<4x24x1xf32>, vector<4x24x1xf32>, vector<4x24x1xf32>, vector<4x24x16xf32>, vector<4x24x1xf32>, vector<4x24x1xf32>, vector<4x24x1xf32>, vector<4x24x1xf32> -> vector<4x24x24xf32>
    %c0_2 = arith.constant 0 : index
    %c0_3 = arith.constant 0 : index
    %c0_4 = arith.constant 0 : index
    %19 = vector.load %arg2[%c0_2, %c0_3, %c0_4] : memref<4x24x24xf32, #tpu.memory_space<vmem>>, vector<4x24x24xf32>
    tpu.vector_store %arg2[%c0_2, %c0_3, %c0_4], %18 {strides = array<i32>} : memref<4x24x24xf32, #tpu.memory_space<vmem>>, vector<4x24x24xf32>,
    return
  }
  func.func @transform_0(%arg0: i32) -> (i32, i32, i32) {
    %c0_i32 = arith.constant 0 : i32
    %c0_i32_0 = arith.constant 0 : i32
    %c0_i32_1 = arith.constant 0 : i32
    return %arg0, %c0_i32, %c0_i32_0 : i32, i32, i32
  }
  func.func @transform_1(%arg0: i32) -> (i32, i32, i32) {
    %c0_i32 = arith.constant 0 : i32
    %c0_i32_0 = arith.constant 0 : i32
    %c0_i32_1 = arith.constant 0 : i32
    return %arg0, %c0_i32, %c0_i32_0 : i32, i32, i32
  }
}

</mosaic_0001>

<llo_original>
// kernel: reflection_padding.1
$region0: #{reflection_padding.1}
  #allocation0 [shape = 'u32[]', space=smem, size = 0x4, offset = 0x4, fixed_abs, tag = 'smem constant byte address 0x4 - core index']
  #allocation1 [shape = 'u32[72,128]{1,0:T(1,128)}', space=vmem, size = 0x9000, scoped, tag = 'internal scratch']
  %s0 = inlined_call_operand.hbm [shape: f32[8,16,16], index: 0, kind: input, shape index: {}]
  %s1 = inlined_call_operand.hbm [shape: f32[8,24,24], index: 1, kind: output, shape index: {}]
  %s2 = sld [smem:[#allocation0]]
  $region41: #{reflection_padding.1} parent=0
    _
  %s4 = ssub.s32 1, %s2
  %s5 = scalar_select 0, %s4, %s2
  $region1: #{reflection_padding.1} parent=0
    #allocation2 [shape = 'u8[65536]{0}', space=vmem, size = 0x10000, scoped, tag = 'input window, operand 0']
    #allocation3 [shape = 's32[2]{0}', space=sflag, size = 0x8, scoped, tag = 'scoped memory for reflection_padding.1']
    #allocation4 [shape = 's32[2]{0}', space=sflag, size = 0x8, scoped, tag = 'scoped memory for reflection_padding.1']
    #allocation5 [shape = 'u8[98304]{0}', space=vmem, size = 0x18000, scoped, tag = 'output window, operand 0']
    %6 = vsyncpa [#allocation3], 0
    %s7 = scalar_lea.sflag [#allocation3], 1
    %8 = vsyncpa %s7, 0
    %9 = vsyncpa [#allocation4], 0
    %s10 = scalar_lea.sflag [#allocation4], 1
    %11 = vsyncpa %s10, 0
    loop: start=0, step=1, limit=4
    $region2: #{reflection_padding.1} parent=1 // loop_pre_header
      _
    $region3: #{reflection_padding.1} parent=1 // loop_header
      %s13 = sphi 0, %s17
      %p14 = scmp.ge.s32.totalorder %s13, 4
      %s23 = sphi 0, %s25
      %s26 = sphi 0, %s23
      %s27 = sphi 0, %s26
      %s43 = sphi 0, %s27
      %s49 = sphi 0, %s51
      %s52 = sphi 0, %s49
      %s53 = sphi 0, %s52
      %s69 = sphi 0, %s53
    $region4: #{reflection_padding.1} parent=1 // loop_header_branch
      %16 = sbr.rel (%p14) target = $region8
    $region5: #{reflection_padding.1} parent=1 // loop_body
      %s18 = ssub.s32 %s13, 1
      %s19 = ssub.s32 %s13, 2
      %s20 = sadd.s32 %s13, 1
      %s21 = ssub.s32 %s13, %s20
      %p22 = scmp.eq.s32.totalorder %s21, 0
      %s24 = sadd.s32 %s23, 1
      %s25 = scalar_select %p22, %s23, %s24
      %p28 = pneg %p22
      %p29 = scmp.eq.s32.totalorder %s13, 1
      %p30 = por %p28, %p29
      %p31 = scmp.ne.s32.totalorder %s23, %s26
      %p32 = scmp.eq.s32.totalorder %s13, 0
      %p33 = por %p31, %p32
      %p34 = scmp.ne.s32.totalorder %s23, %s26
      %p35 = scmp.eq.s32.totalorder %s18, 1
      %p36 = por %p34, %p35
      %p37 = scmp.ne.s32.totalorder %s26, %s27
      %p38 = scmp.eq.s32.totalorder %s18, 0
      %p39 = por %p37, %p38
      %p40 = scmp.ne.s32.totalorder %s26, %s27
      %p41 = scmp.eq.s32.totalorder %s19, 1
      %p42 = por %p40, %p41
      %p44 = scmp.ne.s32.totalorder %s27, %s43
      %p45 = scmp.eq.s32.totalorder %s19, 0
      %p46 = por %p44, %p45
      %s47 = ssub.s32 %s13, %s20
      %p48 = scmp.eq.s32.totalorder %s47, 0
      %s50 = sadd.s32 %s49, 1
      %s51 = scalar_select %p48, %s49, %s50
      %p54 = pneg %p48
      %p55 = scmp.eq.s32.totalorder %s13, 1
      %p56 = por %p54, %p55
      %p57 = scmp.ne.s32.totalorder %s49, %s52
      %p58 = scmp.eq.s32.totalorder %s13, 0
      %p59 = por %p57, %p58
      %p60 = scmp.ne.s32.totalorder %s49, %s52
      %p61 = scmp.eq.s32.totalorder %s18, 1
      %p62 = por %p60, %p61
      %p63 = scmp.ne.s32.totalorder %s52, %s53
      %p64 = scmp.eq.s32.totalorder %s18, 0
      %p65 = por %p63, %p64
      %p66 = scmp.ne.s32.totalorder %s52, %s53
      %p67 = scmp.eq.s32.totalorder %s19, 1
      %p68 = por %p66, %p67
      %p70 = scmp.ne.s32.totalorder %s53, %s69
      %p71 = scmp.eq.s32.totalorder %s19, 0
      %p72 = por %p70, %p71
      %p73 = scmp.le.s32.totalorder 1, %s13
      %p74 = scmp.lt.s32.totalorder %s13, 3
      %p75 = pnand %p73, %p74
      %p76 = pneg %p75
      // Predicated region
      $region9: #{reflection_padding.1} parent=5 // pred_check
        _
      $region10: #{reflection_padding.1} parent=5 // pred_check_branch
        %78 = sbr.rel (%p75) target = $region12
      $region11: #{reflection_padding.1} parent=5 // pred_region
        %s79 = ssub.s32 %s13, 1
      $region12: #{reflection_padding.1} parent=5 // pred_fallthru
        _
      %p80 = scmp.lt.s32.totalorder %s13, 2
      // Predicated region
      $region13: #{reflection_padding.1} parent=5 // pred_check
        %p81 = pneg %p80
      $region14: #{reflection_padding.1} parent=5 // pred_check_branch
        %83 = sbr.rel (%p81) target = $region16
      $region15: #{reflection_padding.1} parent=5 // pred_region
        // Predicated region
        $region17: #{reflection_padding.1} parent=15 // pred_check
          %p84 = pneg %p33
        $region18: #{reflection_padding.1} parent=15 // pred_check_branch
          %86 = sbr.rel (%p84) target = $region20
        $region19: #{reflection_padding.1} parent=15 // pred_region
          %s87 = sand.u32 %s23, 1
          %s88 = scalar_lea.sflag [#allocation3], %s87
          %s89 = sand.u32 %s23, 1
          %s90 = smul.addr %s89, 64
          %s91 = scalar_lea.vmem [#allocation2], %s90
          %s92 = smul.u32 4, %s13
          %94 = vsyncadd %s88, 0
          %s95 = smul.addr %s92, 2
          %s96 = smul.addr %s95, 8
          %s97 = scalar_lea.hbm %s0, %s96
          %s98 = sshll.u32 %s97, 4
          %s99 = int_to_ptr.hbm [resolvable:$true] %s98
          %s100 = sshll.u32 %s91, 4
          %s101 = int_to_ptr.vmem [resolvable:$true] %s100
          %106 = dma.hbm_to_vmem [thread:$0]  %s99, 1024, %s101, %s88, 128, 128, 8
        $region20: #{reflection_padding.1} parent=15 // pred_fallthru
          _
      $region16: #{reflection_padding.1} parent=5 // pred_fallthru
        _
      %p107 = scmp.le.s32.totalorder 1, %s13
      %p108 = scmp.lt.s32.totalorder %s13, 3
      %p109 = pnand %p107, %p108
      %p110 = pneg %p109
      // Predicated region
      $region21: #{reflection_padding.1} parent=5 // pred_check
        _
      $region22: #{reflection_padding.1} parent=5 // pred_check_branch
        %112 = sbr.rel (%p109) target = $region24
      $region23: #{reflection_padding.1} parent=5 // pred_region
        %s113 = ssub.s32 %s13, 1
        %s114 = sand.u32 %s26, 1
        %s115 = scalar_lea.sflag [#allocation3], %s114
        %s116 = sand.u32 %s26, 1
        %s117 = smul.addr %s116, 64
        %s118 = scalar_lea.vmem [#allocation2], %s117
        // Predicated region
        $region25: #{reflection_padding.1} parent=23 // pred_check
          %p119 = pneg %p39
        $region26: #{reflection_padding.1} parent=23 // pred_check_branch
          %121 = sbr.rel (%p119) target = $region28
        $region27: #{reflection_padding.1} parent=23 // pred_region
          %123 = dma.done %s115, 1024
        $region28: #{reflection_padding.1} parent=23 // pred_fallthru
          _
        %s124 = sand.u32 %s26, 1
        %s125 = scalar_lea.sflag [#allocation3], %s124
        %s126 = sand.u32 %s26, 1
        %s127 = smul.addr %s126, 64
        %s128 = scalar_lea.vmem [#allocation2], %s127
        %p129 = pneg %p39
        %p130 = pneg %p36
        %p131 = pneg %p65
        %p132 = pneg %p62
        %s133 = sand.u32 %s52, 1
        %s134 = scalar_lea.sflag [#allocation4], %s133
        %s135 = sand.u32 %s52, 1
        %s136 = smul.addr %s135, 96
        %s137 = scalar_lea.vmem [#allocation5], %s136
        %s138 = smul.u32 4, %s18
        %s139 = smul.u32 4, %s18
        %v140 = vld [vmem:[%s118] sm:$0xff]
        %v141 = vld [vmem:[%s118 + $0x8] sm:$0xff]
        %v142 = vld [vmem:[%s118 + $0x10] sm:$0xff]
        %v143 = vld [vmem:[%s118 + $0x18] sm:$0xff]
        %v144 = vld [vmem:[%s118 + $0x20] sm:$0xff]
        %v145 = vld [vmem:[%s118 + $0x28] sm:$0xff]
        %v146 = vld [vmem:[%s118 + $0x30] sm:$0xff]
        %v147 = vld [vmem:[%s118 + $0x38] sm:$0xff]
        %v152 = vrot.slane %v140, 4
        %v153 = vrot.slane %v142, 4
        %v154 = vrot.slane %v144, 4
        %v155 = vrot.slane %v146, 4
        %v160 = vrot.slane %v140, 2
        %v161 = vrot.slane %v142, 2
        %v162 = vrot.slane %v144, 2
        %v163 = vrot.slane %v146, 2
        %v168 = vrot.slane %v140, 6
        %v169 = vrot.slane %v142, 6
        %v170 = vrot.slane %v144, 6
        %v171 = vrot.slane %v146, 6
        %vm180 = vcmask 1043456
        %v181 = vrot.slane %v141, 4
        %v182 = vsel %vm180, %v152, %v181
        %v183 = vrot.slane %v143, 4
        %v184 = vsel %vm180, %v153, %v183
        %v185 = vrot.slane %v145, 4
        %v186 = vsel %vm180, %v154, %v185
        %v187 = vrot.slane %v147, 4
        %v188 = vsel %vm180, %v155, %v187
        %v197 = vrot.slane %v141, 2
        %v198 = vrot.slane %v143, 2
        %v199 = vrot.slane %v145, 2
        %v200 = vrot.slane %v147, 2
        %v205 = vrot.slane %v141, 6
        %v206 = vrot.slane %v143, 6
        %v207 = vrot.slane %v145, 6
        %v208 = vrot.slane %v147, 6
        %vm213 = vcmask 1040384
        %v214 = vsel %vm213, %v152, %v160
        %v215 = vsel %vm213, %v153, %v161
        %v216 = vsel %vm213, %v154, %v162
        %v217 = vsel %vm213, %v155, %v163
        %vm218 = vcmask 1041408
        %v219 = vsel %vm218, %v214, %v140
        %v220 = vsel %vm218, %v215, %v142
        %v221 = vsel %vm218, %v216, %v144
        %v222 = vsel %vm218, %v217, %v146
        %vm223 = vcmask 1042432
        %v224 = vsel %vm223, %v219, %v168
        %v225 = vsel %vm223, %v220, %v169
        %v226 = vsel %vm223, %v221, %v170
        %v227 = vsel %vm223, %v222, %v171
        %v228 = vsel %vm180, %v224, %v152
        %v229 = vsel %vm180, %v225, %v153
        %v230 = vsel %vm180, %v226, %v154
        %v231 = vsel %vm180, %v227, %v155
        %v232 = vsel %vm180, %v181, %v197
        %v233 = vsel %vm180, %v183, %v198
        %v234 = vsel %vm180, %v185, %v199
        %v235 = vsel %vm180, %v187, %v200
        %vm236 = vcmask 1044480
        %v237 = vsel %vm236, %v232, %v141
        %v238 = vsel %vm236, %v233, %v143
        %v239 = vsel %vm236, %v234, %v145
        %v240 = vsel %vm236, %v235, %v147
        %vm241 = vcmask 1045504
        %v242 = vsel %vm241, %v237, %v205
        %v243 = vsel %vm241, %v238, %v206
        %v244 = vsel %vm241, %v239, %v207
        %v245 = vsel %vm241, %v240, %v208
        %vm246 = vcmask 1046528
        %v247 = vsel %vm246, %v242, %v181
        %v248 = vsel %vm246, %v243, %v183
        %v249 = vsel %vm246, %v244, %v185
        %v250 = vsel %vm246, %v245, %v187
        %259 = vrot.lane.b32.xlu0 %v228, 124
        %v260 = vpop.permute.xlu0 %259
        %261 = vrot.lane.b32.xlu0 %v182, 124
        %v262 = vpop.permute.xlu0 %261
        %263 = vrot.lane.b32.xlu0 %v247, 124
        %v264 = vpop.permute.xlu0 %263
        %265 = vrot.lane.b32.xlu0 %v229, 124
        %v266 = vpop.permute.xlu0 %265
        %267 = vrot.lane.b32.xlu0 %v184, 124
        %v268 = vpop.permute.xlu0 %267
        %269 = vrot.lane.b32.xlu0 %v248, 124
        %v270 = vpop.permute.xlu0 %269
        %271 = vrot.lane.b32.xlu0 %v230, 124
        %v272 = vpop.permute.xlu0 %271
        %273 = vrot.lane.b32.xlu0 %v186, 124
        %v274 = vpop.permute.xlu0 %273
        %275 = vrot.lane.b32.xlu0 %v249, 124
        %v276 = vpop.permute.xlu0 %275
        %277 = vrot.lane.b32.xlu0 %v231, 124
        %v278 = vpop.permute.xlu0 %277
        %279 = vrot.lane.b32.xlu0 %v188, 124
        %v280 = vpop.permute.xlu0 %279
        %281 = vrot.lane.b32.xlu0 %v250, 124
        %v282 = vpop.permute.xlu0 %281
        %295 = vrot.lane.b32.xlu0 %v228, 126
        %v296 = vpop.permute.xlu0 %295
        %297 = vrot.lane.b32.xlu0 %v182, 126
        %v298 = vpop.permute.xlu0 %297
        %299 = vrot.lane.b32.xlu0 %v247, 126
        %v300 = vpop.permute.xlu0 %299
        %301 = vrot.lane.b32.xlu0 %v229, 126
        %v302 = vpop.permute.xlu0 %301
        %303 = vrot.lane.b32.xlu0 %v184, 126
        %v304 = vpop.permute.xlu0 %303
        %305 = vrot.lane.b32.xlu0 %v248, 126
        %v306 = vpop.permute.xlu0 %305
        %307 = vrot.lane.b32.xlu0 %v230, 126
        %v308 = vpop.permute.xlu0 %307
        %309 = vrot.lane.b32.xlu0 %v186, 126
        %v310 = vpop.permute.xlu0 %309
        %311 = vrot.lane.b32.xlu0 %v249, 126
        %v312 = vpop.permute.xlu0 %311
        %313 = vrot.lane.b32.xlu0 %v231, 126
        %v314 = vpop.permute.xlu0 %313
        %315 = vrot.lane.b32.xlu0 %v188, 126
        %v316 = vpop.permute.xlu0 %315
        %317 = vrot.lane.b32.xlu0 %v250, 126
        %v318 = vpop.permute.xlu0 %317
        %331 = vrot.lane.b32.xlu0 %v228, 2
        %v332 = vpop.permute.xlu0 %331
        %333 = vrot.lane.b32.xlu0 %v182, 2
        %v334 = vpop.permute.xlu0 %333
        %335 = vrot.lane.b32.xlu0 %v247, 2
        %v336 = vpop.permute.xlu0 %335
        %337 = vrot.lane.b32.xlu0 %v229, 2
        %v338 = vpop.permute.xlu0 %337
        %339 = vrot.lane.b32.xlu0 %v184, 2
        %v340 = vpop.permute.xlu0 %339
        %341 = vrot.lane.b32.xlu0 %v248, 2
        %v342 = vpop.permute.xlu0 %341
        %343 = vrot.lane.b32.xlu0 %v230, 2
        %v344 = vpop.permute.xlu0 %343
        %345 = vrot.lane.b32.xlu0 %v186, 2
        %v346 = vpop.permute.xlu0 %345
        %347 = vrot.lane.b32.xlu0 %v249, 2
        %v348 = vpop.permute.xlu0 %347
        %349 = vrot.lane.b32.xlu0 %v231, 2
        %v350 = vpop.permute.xlu0 %349
        %351 = vrot.lane.b32.xlu0 %v188, 2
        %v352 = vpop.permute.xlu0 %351
        %353 = vrot.lane.b32.xlu0 %v250, 2
        %v354 = vpop.permute.xlu0 %353
        %367 = vrot.lane.b32.xlu0 %v228, 4
        %v368 = vpop.permute.xlu0 %367
        %369 = vrot.lane.b32.xlu0 %v182, 4
        %v370 = vpop.permute.xlu0 %369
        %371 = vrot.lane.b32.xlu0 %v247, 4
        %v372 = vpop.permute.xlu0 %371
        %373 = vrot.lane.b32.xlu0 %v229, 4
        %v374 = vpop.permute.xlu0 %373
        %375 = vrot.lane.b32.xlu0 %v184, 4
        %v376 = vpop.permute.xlu0 %375
        %377 = vrot.lane.b32.xlu0 %v248, 4
        %v378 = vpop.permute.xlu0 %377
        %379 = vrot.lane.b32.xlu0 %v230, 4
        %v380 = vpop.permute.xlu0 %379
        %381 = vrot.lane.b32.xlu0 %v186, 4
        %v382 = vpop.permute.xlu0 %381
        %383 = vrot.lane.b32.xlu0 %v249, 4
        %v384 = vpop.permute.xlu0 %383
        %385 = vrot.lane.b32.xlu0 %v231, 4
        %v386 = vpop.permute.xlu0 %385
        %387 = vrot.lane.b32.xlu0 %v188, 4
        %v388 = vpop.permute.xlu0 %387
        %389 = vrot.lane.b32.xlu0 %v250, 4
        %v390 = vpop.permute.xlu0 %389
        %403 = vrot.lane.b32.xlu0 %v228, 6
        %v404 = vpop.permute.xlu0 %403
        %405 = vrot.lane.b32.xlu0 %v182, 6
        %v406 = vpop.permute.xlu0 %405
        %407 = vrot.lane.b32.xlu0 %v247, 6
        %v408 = vpop.permute.xlu0 %407
        %409 = vrot.lane.b32.xlu0 %v229, 6
        %v410 = vpop.permute.xlu0 %409
        %411 = vrot.lane.b32.xlu0 %v184, 6
        %v412 = vpop.permute.xlu0 %411
        %413 = vrot.lane.b32.xlu0 %v248, 6
        %v414 = vpop.permute.xlu0 %413
        %415 = vrot.lane.b32.xlu0 %v230, 6
        %v416 = vpop.permute.xlu0 %415
        %417 = vrot.lane.b32.xlu0 %v186, 6
        %v418 = vpop.permute.xlu0 %417
        %419 = vrot.lane.b32.xlu0 %v249, 6
        %v420 = vpop.permute.xlu0 %419
        %421 = vrot.lane.b32.xlu0 %v231, 6
        %v422 = vpop.permute.xlu0 %421
        %423 = vrot.lane.b32.xlu0 %v188, 6
        %v424 = vpop.permute.xlu0 %423
        %425 = vrot.lane.b32.xlu0 %v250, 6
        %v426 = vpop.permute.xlu0 %425
        %439 = vrot.lane.b32.xlu0 %v228, 8
        %v440 = vpop.permute.xlu0 %439
        %441 = vrot.lane.b32.xlu0 %v182, 8
        %v442 = vpop.permute.xlu0 %441
        %443 = vrot.lane.b32.xlu0 %v247, 8
        %v444 = vpop.permute.xlu0 %443
        %445 = vrot.lane.b32.xlu0 %v229, 8
        %v446 = vpop.permute.xlu0 %445
        %447 = vrot.lane.b32.xlu0 %v184, 8
        %v448 = vpop.permute.xlu0 %447
        %449 = vrot.lane.b32.xlu0 %v248, 8
        %v450 = vpop.permute.xlu0 %449
        %451 = vrot.lane.b32.xlu0 %v230, 8
        %v452 = vpop.permute.xlu0 %451
        %453 = vrot.lane.b32.xlu0 %v186, 8
        %v454 = vpop.permute.xlu0 %453
        %455 = vrot.lane.b32.xlu0 %v249, 8
        %v456 = vpop.permute.xlu0 %455
        %457 = vrot.lane.b32.xlu0 %v231, 8
        %v458 = vpop.permute.xlu0 %457
        %459 = vrot.lane.b32.xlu0 %v188, 8
        %v460 = vpop.permute.xlu0 %459
        %461 = vrot.lane.b32.xlu0 %v250, 8
        %v462 = vpop.permute.xlu0 %461
        %475 = vrot.lane.b32.xlu0 %v228, 10
        %v476 = vpop.permute.xlu0 %475
        %477 = vrot.lane.b32.xlu0 %v182, 10
        %v478 = vpop.permute.xlu0 %477
        %479 = vrot.lane.b32.xlu0 %v247, 10
        %v480 = vpop.permute.xlu0 %479
        %481 = vrot.lane.b32.xlu0 %v229, 10
        %v482 = vpop.permute.xlu0 %481
        %483 = vrot.lane.b32.xlu0 %v184, 10
        %v484 = vpop.permute.xlu0 %483
        %485 = vrot.lane.b32.xlu0 %v248, 10
        %v486 = vpop.permute.xlu0 %485
        %487 = vrot.lane.b32.xlu0 %v230, 10
        %v488 = vpop.permute.xlu0 %487
        %489 = vrot.lane.b32.xlu0 %v186, 10
        %v490 = vpop.permute.xlu0 %489
        %491 = vrot.lane.b32.xlu0 %v249, 10
        %v492 = vpop.permute.xlu0 %491
        %493 = vrot.lane.b32.xlu0 %v231, 10
        %v494 = vpop.permute.xlu0 %493
        %495 = vrot.lane.b32.xlu0 %v188, 10
        %v496 = vpop.permute.xlu0 %495
        %497 = vrot.lane.b32.xlu0 %v250, 10
        %v498 = vpop.permute.xlu0 %497
        %511 = vrot.lane.b32.xlu0 %v228, 12
        %v512 = vpop.permute.xlu0 %511
        %513 = vrot.lane.b32.xlu0 %v182, 12
        %v514 = vpop.permute.xlu0 %513
        %515 = vrot.lane.b32.xlu0 %v247, 12
        %v516 = vpop.permute.xlu0 %515
        %517 = vrot.lane.b32.xlu0 %v229, 12
        %v518 = vpop.permute.xlu0 %517
        %519 = vrot.lane.b32.xlu0 %v184, 12
        %v520 = vpop.permute.xlu0 %519
        %521 = vrot.lane.b32.xlu0 %v248, 12
        %v522 = vpop.permute.xlu0 %521
        %523 = vrot.lane.b32.xlu0 %v230, 12
        %v524 = vpop.permute.xlu0 %523
        %525 = vrot.lane.b32.xlu0 %v186, 12
        %v526 = vpop.permute.xlu0 %525
        %527 = vrot.lane.b32.xlu0 %v249, 12
        %v528 = vpop.permute.xlu0 %527
        %529 = vrot.lane.b32.xlu0 %v231, 12
        %v530 = vpop.permute.xlu0 %529
        %531 = vrot.lane.b32.xlu0 %v188, 12
        %v532 = vpop.permute.xlu0 %531
        %533 = vrot.lane.b32.xlu0 %v250, 12
        %v534 = vpop.permute.xlu0 %533
        %vm547 = vcmask 7168
        %v548 = vsel %vm547, %v260, %v296
        %v549 = vsel %vm547, %v262, %v298
        %v550 = vsel %vm547, %v264, %v300
        %v551 = vsel %vm547, %v266, %v302
        %v552 = vsel %vm547, %v268, %v304
        %v553 = vsel %vm547, %v270, %v306
        %v554 = vsel %vm547, %v272, %v308
        %v555 = vsel %vm547, %v274, %v310
        %v556 = vsel %vm547, %v276, %v312
        %v557 = vsel %vm547, %v278, %v314
        %v558 = vsel %vm547, %v280, %v316
        %v559 = vsel %vm547, %v282, %v318
        %vm560 = vcmask 15360
        %v561 = vsel %vm560, %v548, %v228
        %v562 = vsel %vm560, %v549, %v182
        %v563 = vsel %vm560, %v550, %v247
        %v564 = vsel %vm560, %v551, %v229
        %v565 = vsel %vm560, %v552, %v184
        %v566 = vsel %vm560, %v553, %v248
        %v567 = vsel %vm560, %v554, %v230
        %v568 = vsel %vm560, %v555, %v186
        %v569 = vsel %vm560, %v556, %v249
        %v570 = vsel %vm560, %v557, %v231
        %v571 = vsel %vm560, %v558, %v188
        %v572 = vsel %vm560, %v559, %v250
        %vm573 = vcmask 23552
        %v574 = vsel %vm573, %v561, %v332
        %v575 = vsel %vm573, %v562, %v334
        %v576 = vsel %vm573, %v563, %v336
        %v577 = vsel %vm573, %v564, %v338
        %v578 = vsel %vm573, %v565, %v340
        %v579 = vsel %vm573, %v566, %v342
        %v580 = vsel %vm573, %v567, %v344
        %v581 = vsel %vm573, %v568, %v346
        %v582 = vsel %vm573, %v569, %v348
        %v583 = vsel %vm573, %v570, %v350
        %v584 = vsel %vm573, %v571, %v352
        %v585 = vsel %vm573, %v572, %v354
        %vm586 = vcmask 31744
        %v587 = vsel %vm586, %v574, %v368
        %v588 = vsel %vm586, %v575, %v370
        %v589 = vsel %vm586, %v576, %v372
        %v590 = vsel %vm586, %v577, %v374
        %v591 = vsel %vm586, %v578, %v376
        %v592 = vsel %vm586, %v579, %v378
        %v593 = vsel %vm586, %v580, %v380
        %v594 = vsel %vm586, %v581, %v382
        %v595 = vsel %vm586, %v582, %v384
        %v596 = vsel %vm586, %v583, %v386
        %v597 = vsel %vm586, %v584, %v388
        %v598 = vsel %vm586, %v585, %v390
        %vm599 = vcmask 162816
        %v600 = vsel %vm599, %v587, %v404
        %v601 = vsel %vm599, %v588, %v406
        %v602 = vsel %vm599, %v589, %v408
        %v603 = vsel %vm599, %v590, %v410
        %v604 = vsel %vm599, %v591, %v412
        %v605 = vsel %vm599, %v592, %v414
        %v606 = vsel %vm599, %v593, %v416
        %v607 = vsel %vm599, %v594, %v418
        %v608 = vsel %vm599, %v595, %v420
        %v609 = vsel %vm599, %v596, %v422
        %v610 = vsel %vm599, %v597, %v424
        %v611 = vsel %vm599, %v598, %v426
        %vm612 = vcmask 171008
        %v613 = vsel %vm612, %v600, %v440
        %v614 = vsel %vm612, %v601, %v442
        %v615 = vsel %vm612, %v602, %v444
        %v616 = vsel %vm612, %v603, %v446
        %v617 = vsel %vm612, %v604, %v448
        %v618 = vsel %vm612, %v605, %v450
        %v619 = vsel %vm612, %v606, %v452
        %v620 = vsel %vm612, %v607, %v454
        %v621 = vsel %vm612, %v608, %v456
        %v622 = vsel %vm612, %v609, %v458
        %v623 = vsel %vm612, %v610, %v460
        %v624 = vsel %vm612, %v611, %v462
        %vm625 = vcmask 179200
        %v626 = vsel %vm625, %v613, %v476
        %v627 = vsel %vm625, %v614, %v478
        %v628 = vsel %vm625, %v615, %v480
        %v629 = vsel %vm625, %v616, %v482
        %v630 = vsel %vm625, %v617, %v484
        %v631 = vsel %vm625, %v618, %v486
        %v632 = vsel %vm625, %v619, %v488
        %v633 = vsel %vm625, %v620, %v490
        %v634 = vsel %vm625, %v621, %v492
        %v635 = vsel %vm625, %v622, %v494
        %v636 = vsel %vm625, %v623, %v496
        %v637 = vsel %vm625, %v624, %v498
        %vm638 = vcmask 187392
        %v639 = vsel %vm638, %v626, %v512
        %v640 = vsel %vm638, %v627, %v514
        %v641 = vsel %vm638, %v628, %v516
        %v642 = vsel %vm638, %v629, %v518
        %v643 = vsel %vm638, %v630, %v520
        %v644 = vsel %vm638, %v631, %v522
        %v645 = vsel %vm638, %v632, %v524
        %v646 = vsel %vm638, %v633, %v526
        %v647 = vsel %vm638, %v634, %v528
        %v648 = vsel %vm638, %v635, %v530
        %v649 = vsel %vm638, %v636, %v532
        %v650 = vsel %vm638, %v637, %v534
        %vm651 = vcmask 195584
        %652 = vst.msk [vmem:[%s137] sm:$0xff] %vm651, %v639
        %653 = vst.msk [vmem:[%s137 + $0x8] sm:$0xff] %vm651, %v640
        %654 = vst.msk [vmem:[%s137 + $0x10] sm:$0xff] %vm651, %v641
        %655 = vst.msk [vmem:[%s137 + $0x18] sm:$0xff] %vm651, %v642
        %656 = vst.msk [vmem:[%s137 + $0x20] sm:$0xff] %vm651, %v643
        %657 = vst.msk [vmem:[%s137 + $0x28] sm:$0xff] %vm651, %v644
        %658 = vst.msk [vmem:[%s137 + $0x30] sm:$0xff] %vm651, %v645
        %659 = vst.msk [vmem:[%s137 + $0x38] sm:$0xff] %vm651, %v646
        %660 = vst.msk [vmem:[%s137 + $0x40] sm:$0xff] %vm651, %v647
        %661 = vst.msk [vmem:[%s137 + $0x48] sm:$0xff] %vm651, %v648
        %662 = vst.msk [vmem:[%s137 + $0x50] sm:$0xff] %vm651, %v649
        %663 = vst.msk [vmem:[%s137 + $0x58] sm:$0xff] %vm651, %v650
        %s664 = sand.u32 %s52, 1
        %s665 = scalar_lea.sflag [#allocation4], %s664
        %s666 = sand.u32 %s52, 1
        %s667 = smul.addr %s666, 96
        %s668 = scalar_lea.vmem [#allocation5], %s667
        // Predicated region
        $region29: #{reflection_padding.1} parent=23 // pred_check
          %p669 = pneg %p62
        $region30: #{reflection_padding.1} parent=23 // pred_check_branch
          %671 = sbr.rel (%p669) target = $region32
        $region31: #{reflection_padding.1} parent=23 // pred_region
          %s672 = smul.u32 4, %s18
          %674 = vsyncadd %s665, 0
          %s675 = smul.addr %s672, 3
          %s676 = smul.addr %s675, 8
          %s677 = scalar_lea.hbm %s1, %s676
          %s678 = sshll.u32 %s668, 4
          %s679 = int_to_ptr.vmem [resolvable:$true] %s678
          %s680 = sshll.u32 %s677, 4
          %s681 = int_to_ptr.hbm [resolvable:$true] %s680
          %686 = dma.vmem_to_hbm [thread:$0]  %s679, 1536, %s681, %s665, 128, 128, 8
        $region32: #{reflection_padding.1} parent=23 // pred_fallthru
          _
      $region24: #{reflection_padding.1} parent=5 // pred_fallthru
        _
      %p687 = scmp.le.s32.totalorder 2, %s13
      // Predicated region
      $region33: #{reflection_padding.1} parent=5 // pred_check
        %p688 = pneg %p687
      $region34: #{reflection_padding.1} parent=5 // pred_check_branch
        %690 = sbr.rel (%p688) target = $region36
      $region35: #{reflection_padding.1} parent=5 // pred_region
        %s691 = ssub.s32 %s13, 2
        // Predicated region
        $region37: #{reflection_padding.1} parent=35 // pred_check
          %p692 = pneg %p68
        $region38: #{reflection_padding.1} parent=35 // pred_check_branch
          %694 = sbr.rel (%p692) target = $region40
        $region39: #{reflection_padding.1} parent=35 // pred_region
          %s695 = sand.u32 %s53, 1
          %s696 = scalar_lea.sflag [#allocation4], %s695
          %s697 = sand.u32 %s53, 1
          %s698 = smul.addr %s697, 96
          %s699 = scalar_lea.vmem [#allocation5], %s698
          %701 = dma.done %s696, 1536
        $region40: #{reflection_padding.1} parent=35 // pred_fallthru
          _
      $region36: #{reflection_padding.1} parent=5 // pred_fallthru
        _
    $region6: #{reflection_padding.1} parent=1 // loop_footer
      %s17 = sadd.s32 1, %s13
    $region7: #{reflection_padding.1} parent=1 // loop_footer_branch
      %12 = sbr.rel target = $region3
    $region8: #{reflection_padding.1} parent=1 // loop_exit
      _
    %702 = vsyncpa [#allocation3], 1
    %s703 = scalar_lea.sflag [#allocation3], 1
    %704 = vsyncpa %s703, 1
    %705 = vsyncpa [#allocation4], 1
    %s706 = scalar_lea.sflag [#allocation4], 1
    %707 = vsyncpa %s706, 1

</llo_original>
